<compile_context>
chip_gen: v7x
topology: tpu7x:2x2x1
jax: 0.10.0
libtpu: 0.0.40
codegen_flags: <defaults>
</compile_context>

<pallas_src>
import math

import jax
import jax.numpy as jnp
from jax import lax
from jax.experimental import pallas as pl
from jax.experimental.pallas import tpu as pltpu

BN_EPS = 1e-5
_INV_SQRT2 = 1.0 / math.sqrt(2.0)

# Set True to run the MXU matmuls in bf16 (f32 accumulation): ~2-4x matmul
# throughput on v6e/v7x at a small numerics cost vs. the f32 PyTorch reference.
USE_BF16_MATMUL = False


def _mxu_dot(w, x):
    if USE_BF16_MATMUL:
        w = w.astype(jnp.bfloat16)
        x = x.astype(jnp.bfloat16)
    return jnp.dot(w, x, preferred_element_type=jnp.float32)


def _gelu_exact(z):
    # nn.GELU() default: 0.5 * z * (1 + erf(z / sqrt(2)))
    return 0.5 * z * (1.0 + lax.erf(z * _INV_SQRT2))


# ---------------------------------------------------------------------------
# Pass 1: per-channel sum / sum-of-squares of (W @ x), accumulated over grid.
# ---------------------------------------------------------------------------
def _conv_stats_kernel(x_ref, w_ref, sum_ref, sq_ref):
    # x_ref: (1, C_in, tile_L), w_ref: (C_out, C_in)
    # sum_ref / sq_ref: (C_out, 1) accumulators, VMEM-resident across the grid.
    @pl.when(jnp.logical_and(pl.program_id(0) == 0, pl.program_id(1) == 0))
    def _init():
        sum_ref[...] = jnp.zeros_like(sum_ref)
        sq_ref[...] = jnp.zeros_like(sq_ref)

    y = _mxu_dot(w_ref[...], x_ref[0, :, :])          # (C_out, tile_L) f32
    sum_ref[...] += jnp.sum(y, axis=1, keepdims=True)
    sq_ref[...] += jnp.sum(y * y, axis=1, keepdims=True)


# ---------------------------------------------------------------------------
# Pass 2: y = W @ x, fused BN affine (scale*y + shift), optional residual, GELU.
# ---------------------------------------------------------------------------
def _conv_bn_act_kernel(x_ref, w_ref, scale_ref, shift_ref, o_ref):
    y = _mxu_dot(w_ref[...], x_ref[0, :, :])
    z = scale_ref[...] * y + shift_ref[...]
    o_ref[0, :, :] = _gelu_exact(z).astype(o_ref.dtype)


def _conv_bn_res_act_kernel(x_ref, w_ref, scale_ref, shift_ref, res_ref, o_ref):
    y = _mxu_dot(w_ref[...], x_ref[0, :, :])
    z = scale_ref[...] * y + shift_ref[...] + res_ref[0, :, :]
    o_ref[0, :, :] = _gelu_exact(z).astype(o_ref.dtype)


# ---------------------------------------------------------------------------
# Tiling / VMEM sizing helpers.
# ---------------------------------------------------------------------------
def _pick_tile_l(length, c_in, c_out, vmem_budget_bytes=16 << 20):
    """Largest L tile that keeps the double-buffered f32 working set in budget.

    tile_L must be a multiple of 128 or equal to the full L (Mosaic layout rule),
    and must divide L so no partial tiles pollute the stats reduction.
    """
    per_l = 4 * 2 * (c_in + 2 * c_out)     # x + out + residual blocks, 2 buffers
    cap = max(128, vmem_budget_bytes // max(per_l, 1))
    if length <= 128 or length <= cap:
        return length
    best = 0
    t = 128
    limit = min(cap, length)
    while t <= limit:
        if length % t == 0:
            best = t
        t += 128
    if best:
        return best
    # TODO(synk): no 128-aligned divisor of L under the VMEM budget; fall back to
    # the full L per step (may exceed the budget for pathological shapes).
    return length


def _vmem_limit_bytes(c_in, c_out, tile_l):
    per_step = 4 * (2 * c_in * tile_l        # x block, double-buffered
                    + 4 * c_out * tile_l     # out + residual blocks, double-buffered
                    + c_out * c_in           # resident weight
                    + 8 * c_out)             # scale/shift/stat vectors
    limit = 2 * per_step + (8 << 20)         # headroom for in-kernel temporaries
    # Cap below v7x's 64 MiB physical VMEM; never lower than 32 MiB.
    return int(max(32 << 20, min(limit, 56 << 20)))


# ---------------------------------------------------------------------------
# pallas_call wrappers.
# ---------------------------------------------------------------------------
def _conv_stats(x, w, tile_l, vmem_limit):
    n, c_in, length = x.shape
    c_out = w.shape[0]
    grid = (n, length // tile_l)
    s, q = pl.pallas_call(
        _conv_stats_kernel,
        out_shape=(jax.ShapeDtypeStruct((c_out, 1), jnp.float32),
                   jax.ShapeDtypeStruct((c_out, 1), jnp.float32)),
        grid=grid,
        in_specs=[
            pl.BlockSpec((1, c_in, tile_l), lambda b, l: (b, 0, l)),
            pl.BlockSpec((c_out, c_in), lambda b, l: (0, 0)),
        ],
        out_specs=(
            pl.BlockSpec((c_out, 1), lambda b, l: (0, 0)),
            pl.BlockSpec((c_out, 1), lambda b, l: (0, 0)),
        ),
        compiler_params=pltpu.CompilerParams(
            dimension_semantics=("arbitrary", "arbitrary"),
            vmem_limit_bytes=vmem_limit),
    )(x, w)
    return s[:, 0], q[:, 0]


def _conv_bn_act(x, w, scale, shift, residual, tile_l, vmem_limit):
    n, c_in, length = x.shape
    c_out = w.shape[0]
    grid = (n, length // tile_l)
    scale2 = scale.reshape(c_out, 1).astype(jnp.float32)
    shift2 = shift.reshape(c_out, 1).astype(jnp.float32)

    in_specs = [
        pl.BlockSpec((1, c_in, tile_l), lambda b, l: (b, 0, l)),
        pl.BlockSpec((c_out, c_in), lambda b, l: (0, 0)),
        pl.BlockSpec((c_out, 1), lambda b, l: (0, 0)),
        pl.BlockSpec((c_out, 1), lambda b, l: (0, 0)),
    ]
    args = [x, w, scale2, shift2]
    if residual is None:
        kernel = _conv_bn_act_kernel
    else:
        kernel = _conv_bn_res_act_kernel
        in_specs.append(pl.BlockSpec((1, c_out, tile_l), lambda b, l: (b, 0, l)))
        args.append(residual)

    return pl.pallas_call(
        kernel,
        out_shape=jax.ShapeDtypeStruct((n, c_out, length), jnp.float32),
        grid=grid,
        in_specs=in_specs,
        out_specs=pl.BlockSpec((1, c_out, tile_l), lambda b, l: (b, 0, l)),
        compiler_params=pltpu.CompilerParams(
            dimension_semantics=("parallel", "parallel"),
            vmem_limit_bytes=vmem_limit),
    )(*args)


def _bn_fold(sum_, sumsq, count, gamma, beta, eps=BN_EPS):
    mean = sum_ / count
    var = jnp.maximum(sumsq / count - mean * mean, 0.0)   # biased, train-mode BN
    scale = gamma * lax.rsqrt(var + eps)
    shift = beta - scale * mean
    return scale, shift


# ---------------------------------------------------------------------------
# Module-level forward passes.
# ---------------------------------------------------------------------------
def conv_bn_relu_res_1d(x, params):
    """One ConvBNReLURes1D block (kernel_size=1, groups=1), training-mode BN."""
    n, c, length = x.shape
    count = n * length
    w1, w2 = params["w1"], params["w2"]
    c_mid = w1.shape[0]
    # NOTE: conv biases (params['b1'], params['b2']) cancel exactly under
    # training-mode BatchNorm (BN subtracts the per-channel batch mean, which
    # contains the same constant), so they are not needed by the kernels.

    tile_l1 = _pick_tile_l(length, c, c_mid)
    vmem1 = _vmem_limit_bytes(c, c_mid, tile_l1)
    s1, q1 = _conv_stats(x, w1, tile_l1, vmem1)
    scale1, shift1 = _bn_fold(s1, q1, count, params["gamma1"], params["beta1"])
    h = _conv_bn_act(x, w1, scale1, shift1, None, tile_l1, vmem1)

    tile_l2 = _pick_tile_l(length, c_mid, c)
    vmem2 = _vmem_limit_bytes(c_mid, c, tile_l2)
    s2, q2 = _conv_stats(h, w2, tile_l2, vmem2)
    scale2, shift2 = _bn_fold(s2, q2, count, params["gamma2"], params["beta2"])
    return _conv_bn_act(h, w2, scale2, shift2, x, tile_l2, vmem2)


def pos_extraction(x, block_params):
    """PosExtraction forward: sequential stack of ConvBNReLURes1D blocks.

    x: (N, C, L) float32 in native PyTorch NCL layout.
    """
    out = x
    for params in block_params:
        out = conv_bn_relu_res_1d(out, params)
    return out
# TODO(synk): groups > 1 variant (grouped 1x1 convs + the extra conv/BN in net2)
# is not implemented; only the default groups=1 path is supported.


if __name__ == "__main__":
    key = jax.random.PRNGKey(0)

    N, C, L = 2, 4, 16          # input[b, d, g]
    BLOCKS = 2
    RES_EXPANSION = 1.0
    C_MID = int(C * RES_EXPANSION)

    key, kx = jax.random.split(key)
    x = jax.random.normal(kx, (N, C, L), dtype=jnp.float32)

    block_params = []
    for _ in range(BLOCKS):
        key, k1, k2, k3, k4 = jax.random.split(key, 5)
        bnd1 = 1.0 / math.sqrt(C)        # Conv1d uniform init bound (kernel_size=1)
        bnd2 = 1.0 / math.sqrt(C_MID)
        block_params.append(dict(
            w1=jax.random.uniform(k1, (C_MID, C), jnp.float32, -bnd1, bnd1),
            b1=jax.random.uniform(k2, (C_MID,), jnp.float32, -bnd1, bnd1),
            gamma1=jnp.ones((C_MID,), jnp.float32),
            beta1=jnp.zeros((C_MID,), jnp.float32),
            w2=jax.random.uniform(k3, (C, C_MID), jnp.float32, -bnd2, bnd2),
            b2=jax.random.uniform(k4, (C,), jnp.float32, -bnd2, bnd2),
            gamma2=jnp.ones((C,), jnp.float32),
            beta2=jnp.zeros((C,), jnp.float32),
        ))

    out = pos_extraction(x, block_params)
    jax.block_until_ready(out)

    assert out.shape == (N, C, L)
    assert bool(jnp.all(jnp.isfinite(out)))
    print("KERNEL_OK")
</pallas_src>

<mosaic_0001>
module attributes {stable_mosaic.version = 11 : i64} {
  func.func @_conv_stats_kernel(%arg0: i32, %arg1: i32, %arg2: memref<1x4x16xf32, #tpu.memory_space<vmem>>, %arg3: memref<4x4xf32, #tpu.memory_space<vmem>>, %arg4: memref<4x1xf32, #tpu.memory_space<vmem>>, %arg5: memref<4x1xf32, #tpu.memory_space<vmem>>) attributes {dimension_semantics = [#tpu.dimension_semantics<arbitrary>, #tpu.dimension_semantics<arbitrary>], iteration_bounds = array<i64: 2, 1>, scalar_prefetch = 0 : i64, scratch_operands = 0 : i64, tpu.core_type = #tpu.core_type<tc>, window_params = [{transform_indices = @transform_0, window_bounds = array<i64: 1, 4, 16>}, {pipeline_mode = #tpu.pipeline_mode<synchronous>, transform_indices = @transform_1, window_bounds = array<i64: 4, 4>}, {pipeline_mode = #tpu.pipeline_mode<synchronous>, transform_indices = @transform_2, window_bounds = array<i64: 4, 1>}, {pipeline_mode = #tpu.pipeline_mode<synchronous>, transform_indices = @transform_3, window_bounds = array<i64: 4, 1>}]} {
    %c0_i32 = arith.constant 0 : i32
    %0 = arith.cmpi eq, %arg0, %c0_i32 : i32
    %c0_i32_0 = arith.constant 0 : i32
    %1 = arith.cmpi eq, %arg1, %c0_i32_0 : i32
    %2 = arith.andi %0, %1 : i1
    %3 = arith.extui %2 : i1 to i32
    %c0_i32_1 = arith.constant 0 : i32
    %4 = arith.cmpi ne, %3, %c0_i32_1 : i32
    scf.if %4 {
      %cst_16 = arith.constant 0.000000e+00 : f32
      %20 = vector.broadcast %cst_16 : f32 to vector<4x1xf32>
      %c0_17 = arith.constant 0 : index
      %c0_18 = arith.constant 0 : index
      %21 = vector.load %arg4[%c0_17, %c0_18] : memref<4x1xf32, #tpu.memory_space<vmem>>, vector<4x1xf32>
      tpu.vector_store %arg4[%c0_17, %c0_18], %20 {strides = array<i32>} : memref<4x1xf32, #tpu.memory_space<vmem>>, vector<4x1xf32>,
      %cst_19 = arith.constant 0.000000e+00 : f32
      %22 = vector.broadcast %cst_19 : f32 to vector<4x1xf32>
      %c0_20 = arith.constant 0 : index
      %c0_21 = arith.constant 0 : index
      %23 = vector.load %arg5[%c0_20, %c0_21] : memref<4x1xf32, #tpu.memory_space<vmem>>, vector<4x1xf32>
      tpu.vector_store %arg5[%c0_20, %c0_21], %22 {strides = array<i32>} : memref<4x1xf32, #tpu.memory_space<vmem>>, vector<4x1xf32>,
    } else {
    }
    %c0 = arith.constant 0 : index
    %c0_2 = arith.constant 0 : index
    %5 = vector.load %arg3[%c0, %c0_2] : memref<4x4xf32, #tpu.memory_space<vmem>>, vector<4x4xf32>
    %c0_3 = arith.constant 0 : index
    %c0_4 = arith.constant 0 : index
    %c0_5 = arith.constant 0 : index
    %6 = vector.load %arg2[%c0_3, %c0_4, %c0_5] : memref<1x4x16xf32, #tpu.memory_space<vmem>>, vector<1x4x16xf32>
    %7 = vector.shape_cast %6 : vector<1x4x16xf32> to vector<4x16xf32>
    %cst = arith.constant dense<0.000000e+00> : vector<4x16xf32>
    %8 = tpu.matmul %5, %7, %cst {dimension_numbers = #tpu.dot_dimension_numbers<[1], [0], [0], [1], [0, 0, 1, 1], [], []>} : vector<4x4xf32>, vector<4x16xf32>, vector<4x16xf32> -> vector<4x16xf32>
    %c0_6 = arith.constant 0 : index
    %c0_7 = arith.constant 0 : index
    %9 = vector.load %arg4[%c0_6, %c0_7] : memref<4x1xf32, #tpu.memory_space<vmem>>, vector<4x1xf32>
    %cst_8 = arith.constant dense<0.000000e+00> : vector<4xf32>
    %10 = vector.multi_reduction <add>, %8, %cst_8 [1] : vector<4x16xf32> to vector<4xf32>
    %11 = vector.shape_cast %10 : vector<4xf32> to vector<4x1xf32>
    %12 = arith.addf %9, %11 : vector<4x1xf32>
    %c0_9 = arith.constant 0 : index
    %c0_10 = arith.constant 0 : index
    %13 = vector.load %arg4[%c0_9, %c0_10] : memref<4x1xf32, #tpu.memory_space<vmem>>, vector<4x1xf32>
    tpu.vector_store %arg4[%c0_9, %c0_10], %12 {strides = array<i32>} : memref<4x1xf32, #tpu.memory_space<vmem>>, vector<4x1xf32>,
    %c0_11 = arith.constant 0 : index
    %c0_12 = arith.constant 0 : index
    %14 = vector.load %arg5[%c0_11, %c0_12] : memref<4x1xf32, #tpu.memory_space<vmem>>, vector<4x1xf32>
    %15 = arith.mulf %8, %8 : vector<4x16xf32>
    %cst_13 = arith.constant dense<0.000000e+00> : vector<4xf32>
    %16 = vector.multi_reduction <add>, %15, %cst_13 [1] : vector<4x16xf32> to vector<4xf32>
    %17 = vector.shape_cast %16 : vector<4xf32> to vector<4x1xf32>
    %18 = arith.addf %14, %17 : vector<4x1xf32>
    %c0_14 = arith.constant 0 : index
    %c0_15 = arith.constant 0 : index
    %19 = vector.load %arg5[%c0_14, %c0_15] : memref<4x1xf32, #tpu.memory_space<vmem>>, vector<4x1xf32>
    tpu.vector_store %arg5[%c0_14, %c0_15], %18 {strides = array<i32>} : memref<4x1xf32, #tpu.memory_space<vmem>>, vector<4x1xf32>,
    return
  }
  func.func @transform_0(%arg0: i32, %arg1: i32) -> (i32, i32, i32) {
    %c0_i32 = arith.constant 0 : i32
    %c0_i32_0 = arith.constant 0 : i32
    return %arg0, %c0_i32, %arg1 : i32, i32, i32
  }
  func.func @transform_1(%arg0: i32, %arg1: i32) -> (i32, i32) {
    %c0_i32 = arith.constant 0 : i32
    %c0_i32_0 = arith.constant 0 : i32
    %c0_i32_1 = arith.constant 0 : i32
    return %c0_i32, %c0_i32_0 : i32, i32
  }
  func.func @transform_2(%arg0: i32, %arg1: i32) -> (i32, i32) {
    %c0_i32 = arith.constant 0 : i32
    %c0_i32_0 = arith.constant 0 : i32
    %c0_i32_1 = arith.constant 0 : i32
    return %c0_i32, %c0_i32_0 : i32, i32
  }
  func.func @transform_3(%arg0: i32, %arg1: i32) -> (i32, i32) {
    %c0_i32 = arith.constant 0 : i32
    %c0_i32_0 = arith.constant 0 : i32
    %c0_i32_1 = arith.constant 0 : i32
    return %c0_i32, %c0_i32_0 : i32, i32
  }
}

</mosaic_0001>

<llo_original>
// kernel: tpu_custom_call.1
$region0: #{tpu_custom_call.1}
  #allocation0 [shape = 'u32[]', space=smem, size = 0x4, offset = 0x4, fixed_abs, tag = 'smem constant byte address 0x4 - core index']
  #allocation1 [shape = 'u32[144,128]{1,0:T(1,128)}', space=vmem, size = 0x12000, scoped, tag = 'internal scratch']
  %s0 = inlined_call_operand.hbm [shape: f32[2,4,16], index: 0, kind: input, shape index: {}]
  %s1 = inlined_call_operand.hbm [shape: f32[4,4], index: 1, kind: input, shape index: {}]
  %s2 = inlined_call_operand.vmem [shape: f32[4,1], index: 2, kind: output, shape index: {0}]
  %s3 = inlined_call_operand.vmem [shape: f32[4,1], index: 3, kind: output, shape index: {1}]
  %4 = xla_tuple %s2, %s3
  %s5 = sld [smem:[#allocation0]]
  $region61: #{tpu_custom_call.1} parent=0
    _
  %s7 = ssub.s32 1, %s5
  %s8 = scalar_select 0, %s7, %s5
  $region1: #{tpu_custom_call.1} parent=0
    #allocation2 [shape = 'u8[4096]{0}', space=vmem, size = 0x1000, scoped, tag = 'input window, operand 0']
    #allocation3 [shape = 's32[2]{0}', space=sflag, size = 0x8, scoped, tag = 'scoped memory for tpu_custom_call.1']
    #allocation4 [shape = 'u8[2048]{0}', space=vmem, size = 0x800, scoped, tag = 'input window, operand 1, single buffered']
    #allocation5 [shape = 's32[1]{0}', space=sflag, size = 0x4, scoped, tag = 'scoped memory for tpu_custom_call.1']
    %9 = vsyncpa [#allocation3], 0
    %s10 = scalar_lea.sflag [#allocation3], 1
    %11 = vsyncpa %s10, 0
    %12 = vsyncpa [#allocation5], 0
    loop: start=0, step=1, limit=4
    $region2: #{tpu_custom_call.1} parent=1 // loop_pre_header
      _
    $region3: #{tpu_custom_call.1} parent=1 // loop_header
      %s14 = sphi 0, %s18
      %p15 = scmp.ge.s32.totalorder %s14, 4
      %s21 = sphi 0, %s33
      %s22 = sphi 0, %s29
      %s23 = sphi 0, %s21
      %s24 = sphi 0, %s22
      %s25 = sphi 0, %s23
      %s26 = sphi 0, %s24
      %s38 = sphi 0, %s40
      %s41 = sphi 0, %s38
      %s42 = sphi 0, %s41
      %s58 = sphi 0, %s42
      %s62 = sphi 0, %s62
      %s64 = sphi 0, %s62
      %s65 = sphi 0, %s64
      %s79 = sphi 0, %s65
      %s83 = sphi 0, %s83
      %s85 = sphi 0, %s83
      %s86 = sphi 0, %s85
      %s100 = sphi 0, %s86
      %s104 = sphi 0, %s104
      %s106 = sphi 0, %s104
      %s107 = sphi 0, %s106
      %s121 = sphi 0, %s107
    $region4: #{tpu_custom_call.1} parent=1 // loop_header_branch
      %17 = sbr.rel (%p15) target = $region8
    $region5: #{tpu_custom_call.1} parent=1 // loop_body
      %s19 = ssub.s32 %s14, 1
      %s20 = ssub.s32 %s14, 2
      %s27 = sadd.s32 1, %s22
      %p28 = scmp.ge.s32.totalorder %s27, 1
      %s29 = scalar_select %p28, 0, %s27
      %s30 = sadd.s32 1, %s21
      %s31 = scalar_select %p28, %s30, %s21
      %p32 = scmp.ge.s32.totalorder %s31, 2
      %s33 = scalar_select %p32, 0, %s31
      %s34 = ssub.s32 %s21, %s33
      %s35 = ssub.s32 %s22, %s29
      %s36 = sor.u32 %s34, %s35
      %p37 = scmp.eq.s32.totalorder %s36, 0
      %s39 = sadd.s32 %s38, 1
      %s40 = scalar_select %p37, %s38, %s39
      %p43 = pneg %p37
      %p44 = scmp.eq.s32.totalorder %s14, 1
      %p45 = por %p43, %p44
      %p46 = scmp.ne.s32.totalorder %s38, %s41
      %p47 = scmp.eq.s32.totalorder %s14, 0
      %p48 = por %p46, %p47
      %p49 = scmp.ne.s32.totalorder %s38, %s41
      %p50 = scmp.eq.s32.totalorder %s19, 1
      %p51 = por %p49, %p50
      %p52 = scmp.ne.s32.totalorder %s41, %s42
      %p53 = scmp.eq.s32.totalorder %s19, 0
      %p54 = por %p52, %p53
      %p55 = scmp.ne.s32.totalorder %s41, %s42
      %p56 = scmp.eq.s32.totalorder %s20, 1
      %p57 = por %p55, %p56
      %p59 = scmp.ne.s32.totalorder %s42, %s58
      %p60 = scmp.eq.s32.totalorder %s20, 0
      %p61 = por %p59, %p60
      %s63 = sadd.s32 %s62, 1
      %p66 = scmp.eq.s32.totalorder %s14, 1
      %p67 = scmp.ne.s32.totalorder %s62, %s64
      %p68 = scmp.eq.s32.totalorder %s14, 0
      %p69 = por %p67, %p68
      %p70 = scmp.ne.s32.totalorder %s62, %s64
      %p71 = scmp.eq.s32.totalorder %s19, 1
      %p72 = por %p70, %p71
      %p73 = scmp.ne.s32.totalorder %s64, %s65
      %p74 = scmp.eq.s32.totalorder %s19, 0
      %p75 = por %p73, %p74
      %p76 = scmp.ne.s32.totalorder %s64, %s65
      %p77 = scmp.eq.s32.totalorder %s20, 1
      %p78 = por %p76, %p77
      %p80 = scmp.ne.s32.totalorder %s65, %s79
      %p81 = scmp.eq.s32.totalorder %s20, 0
      %p82 = por %p80, %p81
      %s84 = sadd.s32 %s83, 1
      %p87 = scmp.eq.s32.totalorder %s14, 1
      %p88 = scmp.ne.s32.totalorder %s83, %s85
      %p89 = scmp.eq.s32.totalorder %s14, 0
      %p90 = por %p88, %p89
      %p91 = scmp.ne.s32.totalorder %s83, %s85
      %p92 = scmp.eq.s32.totalorder %s19, 1
      %p93 = por %p91, %p92
      %p94 = scmp.ne.s32.totalorder %s85, %s86
      %p95 = scmp.eq.s32.totalorder %s19, 0
      %p96 = por %p94, %p95
      %p97 = scmp.ne.s32.totalorder %s85, %s86
      %p98 = scmp.eq.s32.totalorder %s20, 1
      %p99 = por %p97, %p98
      %p101 = scmp.ne.s32.totalorder %s86, %s100
      %p102 = scmp.eq.s32.totalorder %s20, 0
      %p103 = por %p101, %p102
      %s105 = sadd.s32 %s104, 1
      %p108 = scmp.eq.s32.totalorder %s14, 1
      %p109 = scmp.ne.s32.totalorder %s104, %s106
      %p110 = scmp.eq.s32.totalorder %s14, 0
      %p111 = por %p109, %p110
      %p112 = scmp.ne.s32.totalorder %s104, %s106
      %p113 = scmp.eq.s32.totalorder %s19, 1
      %p114 = por %p112, %p113
      %p115 = scmp.ne.s32.totalorder %s106, %s107
      %p116 = scmp.eq.s32.totalorder %s19, 0
      %p117 = por %p115, %p116
      %p118 = scmp.ne.s32.totalorder %s106, %s107
      %p119 = scmp.eq.s32.totalorder %s20, 1
      %p120 = por %p118, %p119
      %p122 = scmp.ne.s32.totalorder %s107, %s121
      %p123 = scmp.eq.s32.totalorder %s20, 0
      %p124 = por %p122, %p123
      %p125 = scmp.le.s32.totalorder 1, %s14
      %p126 = scmp.lt.s32.totalorder %s14, 3
      %p127 = pnand %p125, %p126
      %p128 = pneg %p127
      // Predicated region
      $region9: #{tpu_custom_call.1} parent=5 // pred_check
        _
      $region10: #{tpu_custom_call.1} parent=5 // pred_check_branch
        %130 = sbr.rel (%p127) target = $region12
      $region11: #{tpu_custom_call.1} parent=5 // pred_region
        %s131 = ssub.s32 %s14, 1
        // Predicated region
        $region13: #{tpu_custom_call.1} parent=11 // pred_check
          %p132 = pneg %p75
        $region14: #{tpu_custom_call.1} parent=11 // pred_check_branch
          %134 = sbr.rel (%p132) target = $region16
        $region15: #{tpu_custom_call.1} parent=11 // pred_region
          %s136 = ssub.s32 64, 64
          %137 = vsyncadd [#allocation5], %s136
          %s139 = sshll.u32 [#allocation4], 4
          %s140 = int_to_ptr.vmem [resolvable:$true] %s139
          %142 = dma.hbm_to_vmem [thread:$0]  %s1, 64, %s140, [#allocation5]
        $region16: #{tpu_custom_call.1} parent=11 // pred_fallthru
          _
      $region12: #{tpu_custom_call.1} parent=5 // pred_fallthru
        _
      %p143 = scmp.lt.s32.totalorder %s14, 2
      // Predicated region
      $region17: #{tpu_custom_call.1} parent=5 // pred_check
        %p144 = pneg %p143
      $region18: #{tpu_custom_call.1} parent=5 // pred_check_branch
        %146 = sbr.rel (%p144) target = $region20
      $region19: #{tpu_custom_call.1} parent=5 // pred_region
        // Predicated region
        $region21: #{tpu_custom_call.1} parent=19 // pred_check
          %p147 = pneg %p48
        $region22: #{tpu_custom_call.1} parent=19 // pred_check_branch
          %149 = sbr.rel (%p147) target = $region24
        $region23: #{tpu_custom_call.1} parent=19 // pred_region
          %s150 = sand.u32 %s38, 1
          %s151 = scalar_lea.sflag [#allocation3], %s150
          %s152 = sand.u32 %s38, 1
          %s153 = smul.addr %s152, 4
          %s154 = scalar_lea.vmem [#allocation2], %s153
          %s156 = ssub.s32 64, 64
          %157 = vsyncadd %s151, %s156
          %s158 = sadd.s32 %s22, %s21
          %s159 = smul.addr %s158, 64
          %s160 = scalar_lea.hbm %s0, %s159
          %s162 = sshll.u32 %s154, 4
          %s163 = int_to_ptr.vmem [resolvable:$true] %s162
          %165 = dma.hbm_to_vmem [thread:$0]  %s160, 64, %s163, %s151
        $region24: #{tpu_custom_call.1} parent=19 // pred_fallthru
          _
      $region20: #{tpu_custom_call.1} parent=5 // pred_fallthru
        _
      %p166 = scmp.le.s32.totalorder 1, %s14
      %p167 = scmp.lt.s32.totalorder %s14, 3
      %p168 = pnand %p166, %p167
      %p169 = pneg %p168
      // Predicated region
      $region25: #{tpu_custom_call.1} parent=5 // pred_check
        _
      $region26: #{tpu_custom_call.1} parent=5 // pred_check_branch
        %171 = sbr.rel (%p168) target = $region28
      $region27: #{tpu_custom_call.1} parent=5 // pred_region
        %s172 = ssub.s32 %s14, 1
        %s173 = sand.u32 %s41, 1
        %s174 = scalar_lea.sflag [#allocation3], %s173
        %s175 = sand.u32 %s41, 1
        %s176 = smul.addr %s175, 4
        %s177 = scalar_lea.vmem [#allocation2], %s176
        // Predicated region
        $region29: #{tpu_custom_call.1} parent=27 // pred_check
          %p178 = pneg %p54
        $region30: #{tpu_custom_call.1} parent=27 // pred_check_branch
          %180 = sbr.rel (%p178) target = $region32
        $region31: #{tpu_custom_call.1} parent=27 // pred_region
          %181 = dma.done %s174, 64
        $region32: #{tpu_custom_call.1} parent=27 // pred_fallthru
          _
        // Predicated region
        $region33: #{tpu_custom_call.1} parent=27 // pred_check
          %p182 = pneg %p75
        $region34: #{tpu_custom_call.1} parent=27 // pred_check_branch
          %184 = sbr.rel (%p182) target = $region36
        $region35: #{tpu_custom_call.1} parent=27 // pred_region
          %185 = dma.done [#allocation5], 64
        $region36: #{tpu_custom_call.1} parent=27 // pred_fallthru
          _
        %s186 = sand.u32 %s41, 1
        %s187 = scalar_lea.sflag [#allocation3], %s186
        %s188 = sand.u32 %s41, 1
        %s189 = smul.addr %s188, 4
        %s190 = scalar_lea.vmem [#allocation2], %s189
        %p191 = pneg %p54
        %p192 = pneg %p51
        %p193 = pneg %p75
        %p194 = pneg %p72
        %p195 = pneg %p96
        %p196 = pneg %p93
        %p197 = pneg %p117
        %p198 = pneg %p114
        %p199 = scmp.eq.s32.totalorder %s23, 0
        %p200 = scmp.eq.s32.totalorder %s24, 0
        %p201 = pnand %p199, %p200
        %p202 = pneg %p201
        // Predicated region
        $region37: #{tpu_custom_call.1} parent=27 // pred_check
          _
        $region38: #{tpu_custom_call.1} parent=27 // pred_check_branch
          %204 = sbr.rel (%p201) target = $region40
        $region39: #{tpu_custom_call.1} parent=27 // pred_region
          %vm205 = vcmask 3072
          %206 = vst.msk [vmem:[%s2] sm:$0xf] %vm205, 0.0
          %207 = vst.msk [vmem:[%s3] sm:$0xf] %vm205, 0.0
        $region40: #{tpu_custom_call.1} parent=27 // pred_fallthru
          _
        %v208 = vld [vmem:[#allocation4] sm:$0xf]
        %v209 = vld [vmem:[%s177] sm:$0xf]
        %vm210 = vcmask 31744
        %v212 = vsel %vm210, %v208, 0
        %vm214 = vcmask 1043456
        %v216 = vsel %vm214, %v209, 0
        %218 = vmatprep.subr.mxu0 0.0
        %219 = vmatpush1.msra.mxu0 %v216
        %220 = vmatprep.subr.mxu0 0.0
        %221 = vmatpush1.msra.mxu0 0.0
        %222 = vmatprep.subr.mxu0 0.0
        %223 = vmatpush1.msra.mxu0 0.0
        %224 = vmatprep.subr.mxu0 0.0
        %225 = vmatpush1.msra.mxu0 0.0
        %226 = vmatprep.subr.mxu0 0.0
        %227 = vmatpush1.msra.mxu0 0.0
        %228 = vmatprep.subr.mxu0 0.0
        %229 = vmatpush1.msra.mxu0 0.0
        %230 = vmatprep.subr.mxu0 0.0
        %231 = vmatpush1.msra.mxu0 0.0
        %232 = vmatprep.subr.mxu0 0.0
        %233 = vmatpush1.msra.mxu0 0.0
        %234 = vmatprep.subr.mxu0 0.0
        %235 = vmatpush1.msra.mxu0 0.0
        %236 = vmatprep.subr.mxu0 0.0
        %237 = vmatpush1.msra.mxu0 0.0
        %238 = vmatprep.subr.mxu0 0.0
        %239 = vmatpush1.msra.mxu0 0.0
        %240 = vmatprep.subr.mxu0 0.0
        %241 = vmatpush1.msra.mxu0 0.0
        %242 = vmatprep.subr.mxu0 0.0
        %243 = vmatpush1.msra.mxu0 0.0
        %244 = vmatprep.subr.mxu0 0.0
        %245 = vmatpush1.msra.mxu0 0.0
        %246 = vmatprep.subr.mxu0 0.0
        %247 = vmatpush1.msra.mxu0 0.0
        %248 = vmatprep.subr.mxu0 0.0
        %249 = vmatpush1.msra.mxu0 0.0
        %250 = vmatprep.subr.mxu0 0.0
        %251 = vmatpush1.msra.mxu0 0.0
        %252 = vmatprep.subr.mxu0 0.0
        %253 = vmatpush1.msra.mxu0 0.0
        %254 = vmatprep.subr.mxu0 0.0
        %255 = vmatpush1.msra.mxu0 0.0
        %256 = vmatprep.subr.mxu0 0.0
        %257 = vmatpush1.msra.mxu0 0.0
        %258 = vmatprep.subr.mxu0 0.0
        %259 = vmatpush1.msra.mxu0 0.0
        %260 = vmatprep.subr.mxu0 0.0
        %261 = vmatpush1.msra.mxu0 0.0
        %262 = vmatprep.subr.mxu0 0.0
        %263 = vmatpush1.msra.mxu0 0.0
        %264 = vmatprep.subr.mxu0 0.0
        %265 = vmatpush1.msra.mxu0 0.0
        %266 = vmatprep.subr.mxu0 0.0
        %267 = vmatpush1.msra.mxu0 0.0
        %268 = vmatprep.subr.mxu0 0.0
        %269 = vmatpush1.msra.mxu0 0.0
        %270 = vmatprep.subr.mxu0 0.0
        %271 = vmatpush1.msra.mxu0 0.0
        %272 = vmatprep.subr.mxu0 0.0
        %273 = vmatpush1.msra.mxu0 0.0
        %274 = vmatprep.subr.mxu0 0.0
        %275 = vmatpush1.msra.mxu0 0.0
        %276 = vmatprep.subr.mxu0 0.0
        %277 = vmatpush1.msra.mxu0 0.0
        %278 = vmatprep.subr.mxu0 0.0
        %279 = vmatpush1.msra.mxu0 0.0
        %280 = vmatprep.subr.mxu0 0.0
        %281 = vmatpush1.msra.mxu0 0.0
        %282 = vmatprep.mubr.f32.mxu0 0.0
        %283 = vmatmul.mubr.f32.gmra.mrb[0].mxu0 %v212
        %v284 = vpop.f32.mrb[0].mxu0
        %v285 = vadd.f32 0.0, %v284
        %v286 = vpop.f32.mrb[0].mxu0
        %287 = vdwg.mxu0
        %v288 = vld [vmem:[%s2] sm:$0xf]
        %vm289 = vcmask 125952
        %v290 = vsel %vm289, %v285, 0.0
        %291 = vadd.xlane.f32.xlu0 %v290
        %v292 = vpop.xlane.xlu0 %291
        %v293 = vadd.f32 %v288, %v292
        %vm294 = vcmask 3072
        %295 = vst.msk [vmem:[%s2] sm:$0xf] %vm294, %v293
        %v296 = vld [vmem:[%s3] sm:$0xf]
        %v297 = vmul.f32 %v285, %v285
        %v298 = vsel %vm289, %v297, 0.0
        %299 = vadd.xlane.f32.xlu0 %v298
        %v300 = vpop.xlane.xlu0 %299
        %v301 = vadd.f32 %v296, %v300
        %302 = vst.msk [vmem:[%s3] sm:$0xf] %vm294, %v301
        // Predicated region
        $region41: #{tpu_custom_call.1} parent=27 // pred_check
          %p303 = pneg %p93
        $region42: #{tpu_custom_call.1} parent=27 // pred_check_branch
          %305 = sbr.rel (%p303) target = $region44
        $region43: #{tpu_custom_call.1} parent=27 // pred_region
          _
        $region44: #{tpu_custom_call.1} parent=27 // pred_fallthru
          _
        // Predicated region
        $region45: #{tpu_custom_call.1} parent=27 // pred_check
          %p306 = pneg %p114
        $region46: #{tpu_custom_call.1} parent=27 // pred_check_branch
          %308 = sbr.rel (%p306) target = $region48
        $region47: #{tpu_custom_call.1} parent=27 // pred_region
          _
        $region48: #{tpu_custom_call.1} parent=27 // pred_fallthru
          _
        // Predicated region
        $region49: #{tpu_custom_call.1} parent=27 // pred_check
          %p309 = pneg %p93
        $region50: #{tpu_custom_call.1} parent=27 // pred_check_branch
          %311 = sbr.rel (%p309) target = $region52
        $region51: #{tpu_custom_call.1} parent=27 // pred_region
          _
        $region52: #{tpu_custom_call.1} parent=27 // pred_fallthru
          _
        // Predicated region
        $region53: #{tpu_custom_call.1} parent=27 // pred_check
          %p312 = pneg %p114
        $region54: #{tpu_custom_call.1} parent=27 // pred_check_branch
          %314 = sbr.rel (%p312) target = $region56
        $region55: #{tpu_custom_call.1} parent=27 // pred_region
          _
        $region56: #{tpu_custom_call.1} parent=27 // pred_fallthru
          _
      $region28: #{tpu_custom_call.1} parent=5 // pred_fallthru
        _
      %p315 = scmp.le.s32.totalorder 2, %s14
      // Predicated region
      $region57: #{tpu_custom_call.1} parent=5 // pred_check
        %p316 = pneg %p315
      $region58: #{tpu_custom_call.1} parent=5 // pred_check_branch
        %318 = sbr.rel (%p316) target = $region60
      $region59: #{tpu_custom_call.1} parent=5 // pred_region
        %s319 = ssub.s32 %s14, 2
      $region60: #{tpu_custom_call.1} parent=5 // pred_fallthru
        _
    $region6: #{tpu_custom_call.1} parent=1 // loop_footer
      %s18 = sadd.s32 1, %s14
    $region7: #{tpu_custom_call.1} parent=1 // loop_footer_branch
      %13 = sbr.rel target = $region3
    $region8: #{tpu_custom_call.1} parent=1 // loop_exit
      _
    %320 = vsyncpa [#allocation3], 1
    %s321 = scalar_lea.sflag [#allocation3], 1
    %322 = vsyncpa %s321, 1
    %323 = vsyncpa [#allocation5], 1

</llo_original>
